<compile_context>
chip_gen: v6e
topology: v6e:2x2x1
jax: 0.10.0
libtpu: 0.0.40
codegen_flags: <defaults>
</compile_context>

<pallas_src>
import functools

import jax
import jax.numpy as jnp
from jax.experimental import pallas as pl
from jax.experimental.pallas import tpu as pltpu


# ----------------------------- model config (synthetic) -----------------------------
INPUT_DIM = 32
LAYER_SIZES = [64, 32, 1]                   # params_layers_sizes
LAYER_ACTS = ["relu", "tanh", "linear"]     # params_layers_actFuncs
MU_BIAS_INIT = 0.1                          # nn.init.constant_(bias, 0.1)

LANE = 128                                   # vreg lane width
SUBLANE = 8                                  # vreg sublane count (f32)


def _round_up(n, m):
    return ((n + m - 1) // m) * m


def _apply_act(name, h):
    if name == "relu":
        return jnp.maximum(h, 0.0)           # VPU
    if name == "tanh":
        return jnp.tanh(h)                   # EUP (own bundle slot)
    if name == "sigmoid":
        return jax.nn.sigmoid(h)
    if name == "elu":
        return jnp.where(h > 0, h, jnp.expm1(h))
    if name == "linear":
        return h
    raise ValueError(f"unknown activation {name}")


def fcnn_kernel(*refs, acts):
    """Fused MLP forward for one batch tile.

    refs = (x_ref, w0_ref, b0_ref, w1_ref, b1_ref, ..., o_ref)
    w_ref: (in_padded, out_padded)  (bf16 or f32), b_ref: (1, out_padded) f32.
    All matmuls + bias + activations for every layer are computed in-kernel.
    """
    x_ref = refs[0]
    o_ref = refs[-1]
    param_refs = refs[1:-1]

    h = x_ref[...]                                     # (bm, in_dim) f32
    for i, act in enumerate(acts):
        w_ref = param_refs[2 * i]
        b_ref = param_refs[2 * i + 1]
        # MXU matmul with f32 accumulation; lane-dense (128-wide) bias add on VPU.
        h = jnp.dot(h.astype(w_ref.dtype), w_ref[...],
                    preferred_element_type=jnp.float32) + b_ref[...]
        h = _apply_act(act, h)
    o_ref[...] = h.astype(o_ref.dtype)


def fcnn_forward(x, weights, biases, acts, *, block_m=512, use_bf16=True):
    """x: (batch, input_dim) f32.  weights[i]: (in_i, out_i).  biases[i]: (out_i,)."""
    batch, in_dim = x.shape
    out_dim = weights[-1].shape[1]

    # --- batch tiling: big tiles, ragged tail handled by zero-padding ---
    bm = min(_round_up(block_m, SUBLANE), _round_up(batch, SUBLANE))
    bm = max(bm, SUBLANE)
    padded_batch = _round_up(batch, bm)
    if padded_batch != batch:
        x = jnp.pad(x, ((0, padded_batch - batch), (0, 0)))

    # --- pad all layer widths to 128-lane multiples, cast params, build specs ---
    param_dtype = jnp.bfloat16 if use_bf16 else jnp.float32
    params = []
    in_specs = [pl.BlockSpec((bm, in_dim), lambda i: (i, 0))]
    prev_width = in_dim
    for w, b in zip(weights, biases):
        k, n = w.shape
        n_pad = _round_up(n, LANE)
        w_p = jnp.zeros((prev_width, n_pad), dtype=param_dtype)
        w_p = w_p.at[:k, :n].set(w.astype(param_dtype))
        b_p = jnp.zeros((1, n_pad), dtype=jnp.float32).at[0, :n].set(b)
        params.extend([w_p, b_p])
        # Constant index_map -> same block every grid step -> parameters stay
        # resident in VMEM (no per-step re-DMA of the ~10 KiB of weights).
        in_specs.append(pl.BlockSpec(w_p.shape, lambda i: (0, 0)))
        in_specs.append(pl.BlockSpec(b_p.shape, lambda i: (0, 0)))
        prev_width = n_pad

    out_pad = _round_up(out_dim, LANE)
    kernel = functools.partial(fcnn_kernel, acts=tuple(acts))

    out_padded = pl.pallas_call(
        kernel,
        out_shape=jax.ShapeDtypeStruct((padded_batch, out_pad), jnp.float32),
        grid_spec=pltpu.PrefetchScalarGridSpec(
            num_scalar_prefetch=0,
            grid=(padded_batch // bm,),
            in_specs=in_specs,
            out_specs=pl.BlockSpec((bm, out_pad), lambda i: (i, 0)),
        ),
        compiler_params=pltpu.CompilerParams(
            dimension_semantics=("parallel",),   # batch tiles shard across TCs (v7x)
        ),
    )(x, *params)

    # Strip batch padding and the lane padding of the last layer.
    return out_padded[:batch, :out_dim]


def init_params(key, input_dim, layer_sizes):
    """Deterministic synthetic init. Weights ~ N(0, 1/sqrt(fan_in)); bias = 0.1
    (matching nn.init.constant_(bias, mu_bias_init) from the module)."""
    weights, biases = [], []
    fan_in = input_dim
    for out_dim in layer_sizes:
        key, sub = jax.random.split(key)
        w = (jax.random.normal(sub, (fan_in, out_dim), dtype=jnp.float32)
             / jnp.sqrt(jnp.float32(fan_in)))
        b = jnp.full((out_dim,), MU_BIAS_INIT, dtype=jnp.float32)
        weights.append(w)
        biases.append(b)
        fan_in = out_dim
    return weights, biases


def reference_forward(x, weights, biases, acts):
    h = x
    for w, b, a in zip(weights, biases, acts):
        h = _apply_act(a, h @ w + b)
    return h


if __name__ == "__main__":
    key = jax.random.PRNGKey(0)
    key, xkey = jax.random.split(key)

    # Small demo shapes: non-multiple batch exercises the padded ragged tail,
    # and block_m=64 gives a 2-step grid (both v7x TensorCores get a tile).
    batch = 100
    x = jax.random.normal(xkey, (batch, INPUT_DIM), dtype=jnp.float32)
    weights, biases = init_params(key, INPUT_DIM, LAYER_SIZES)

    out = fcnn_forward(x, weights, biases, LAYER_ACTS, block_m=64, use_bf16=True)
    out = jax.block_until_ready(out)

    ref = reference_forward(x, weights, biases, LAYER_ACTS)
    assert out.shape == (batch, LAYER_SIZES[-1])
    # bf16 matmuls (f32 accumulation) -> relaxed tolerance vs the f32 reference.
    assert jnp.allclose(out, ref, atol=5e-2, rtol=5e-2), "mismatch vs JAX reference"

    print("KERNEL_OK")
</pallas_src>

<mosaic_0001>
module attributes {stable_mosaic.version = 11 : i64} {
  func.func @fcnn_kernel(%arg0: i32, %arg1: memref<64x32xf32, #tpu.memory_space<vmem>>, %arg2: memref<32x128xbf16, #tpu.memory_space<vmem>>, %arg3: memref<1x128xf32, #tpu.memory_space<vmem>>, %arg4: memref<128x128xbf16, #tpu.memory_space<vmem>>, %arg5: memref<1x128xf32, #tpu.memory_space<vmem>>, %arg6: memref<128x128xbf16, #tpu.memory_space<vmem>>, %arg7: memref<1x128xf32, #tpu.memory_space<vmem>>, %arg8: memref<64x128xf32, #tpu.memory_space<vmem>>) attributes {dimension_semantics = [#tpu.dimension_semantics<parallel>], iteration_bounds = array<i64: 2>, scalar_prefetch = 0 : i64, scratch_operands = 0 : i64, tpu.core_type = #tpu.core_type<tc>, window_params = [{transform_indices = @transform_0, window_bounds = array<i64: 64, 32>}, {pipeline_mode = #tpu.pipeline_mode<synchronous>, transform_indices = @transform_1, window_bounds = array<i64: 32, 128>}, {pipeline_mode = #tpu.pipeline_mode<synchronous>, transform_indices = @transform_2, window_bounds = array<i64: 1, 128>}, {pipeline_mode = #tpu.pipeline_mode<synchronous>, transform_indices = @transform_3, window_bounds = array<i64: 128, 128>}, {pipeline_mode = #tpu.pipeline_mode<synchronous>, transform_indices = @transform_4, window_bounds = array<i64: 1, 128>}, {pipeline_mode = #tpu.pipeline_mode<synchronous>, transform_indices = @transform_5, window_bounds = array<i64: 128, 128>}, {pipeline_mode = #tpu.pipeline_mode<synchronous>, transform_indices = @transform_6, window_bounds = array<i64: 1, 128>}, {transform_indices = @transform_7, window_bounds = array<i64: 64, 128>}]} {
    %c0 = arith.constant 0 : index
    %c0_0 = arith.constant 0 : index
    %0 = vector.load %arg1[%c0, %c0_0] : memref<64x32xf32, #tpu.memory_space<vmem>>, vector<64x32xf32>
    %1 = arith.truncf %0 : vector<64x32xf32> to vector<64x32xbf16>
    %c0_1 = arith.constant 0 : index
    %c0_2 = arith.constant 0 : index
    %2 = vector.load %arg2[%c0_1, %c0_2] : memref<32x128xbf16, #tpu.memory_space<vmem>>, vector<32x128xbf16>
    %cst = arith.constant dense<0.000000e+00> : vector<64x128xf32>
    %3 = tpu.matmul %1, %2, %cst {dimension_numbers = #tpu.dot_dimension_numbers<[1], [0], [0], [1], [0, 0, 1, 1], [], []>} : vector<64x32xbf16>, vector<32x128xbf16>, vector<64x128xf32> -> vector<64x128xf32>
    %c0_3 = arith.constant 0 : index
    %c0_4 = arith.constant 0 : index
    %4 = vector.load %arg3[%c0_3, %c0_4] : memref<1x128xf32, #tpu.memory_space<vmem>>, vector<1x128xf32>
    %5 = vector.broadcast %4 : vector<1x128xf32> to vector<64x128xf32>
    %6 = arith.addf %3, %5 : vector<64x128xf32>
    %cst_5 = arith.constant 0.000000e+00 : f32
    %7 = vector.broadcast %cst_5 : f32 to vector<64x128xf32>
    %8 = arith.maximumf %6, %7 : vector<64x128xf32>
    %9 = arith.truncf %8 : vector<64x128xf32> to vector<64x128xbf16>
    %c0_6 = arith.constant 0 : index
    %c0_7 = arith.constant 0 : index
    %10 = vector.load %arg4[%c0_6, %c0_7] : memref<128x128xbf16, #tpu.memory_space<vmem>>, vector<128x128xbf16>
    %cst_8 = arith.constant dense<0.000000e+00> : vector<64x128xf32>
    %11 = tpu.matmul %9, %10, %cst_8 {dimension_numbers = #tpu.dot_dimension_numbers<[1], [0], [0], [1], [0, 0, 1, 1], [], []>} : vector<64x128xbf16>, vector<128x128xbf16>, vector<64x128xf32> -> vector<64x128xf32>
    %c0_9 = arith.constant 0 : index
    %c0_10 = arith.constant 0 : index
    %12 = vector.load %arg5[%c0_9, %c0_10] : memref<1x128xf32, #tpu.memory_space<vmem>>, vector<1x128xf32>
    %13 = vector.broadcast %12 : vector<1x128xf32> to vector<64x128xf32>
    %14 = arith.addf %11, %13 : vector<64x128xf32>
    %15 = math.tanh %14 : vector<64x128xf32>
    %16 = arith.truncf %15 : vector<64x128xf32> to vector<64x128xbf16>
    %c0_11 = arith.constant 0 : index
    %c0_12 = arith.constant 0 : index
    %17 = vector.load %arg6[%c0_11, %c0_12] : memref<128x128xbf16, #tpu.memory_space<vmem>>, vector<128x128xbf16>
    %cst_13 = arith.constant dense<0.000000e+00> : vector<64x128xf32>
    %18 = tpu.matmul %16, %17, %cst_13 {dimension_numbers = #tpu.dot_dimension_numbers<[1], [0], [0], [1], [0, 0, 1, 1], [], []>} : vector<64x128xbf16>, vector<128x128xbf16>, vector<64x128xf32> -> vector<64x128xf32>
    %c0_14 = arith.constant 0 : index
    %c0_15 = arith.constant 0 : index
    %19 = vector.load %arg7[%c0_14, %c0_15] : memref<1x128xf32, #tpu.memory_space<vmem>>, vector<1x128xf32>
    %20 = vector.broadcast %19 : vector<1x128xf32> to vector<64x128xf32>
    %21 = arith.addf %18, %20 : vector<64x128xf32>
    %c0_16 = arith.constant 0 : index
    %c0_17 = arith.constant 0 : index
    %22 = vector.load %arg8[%c0_16, %c0_17] : memref<64x128xf32, #tpu.memory_space<vmem>>, vector<64x128xf32>
    tpu.vector_store %arg8[%c0_16, %c0_17], %21 {strides = array<i32>} : memref<64x128xf32, #tpu.memory_space<vmem>>, vector<64x128xf32>,
    return
  }
  func.func @transform_0(%arg0: i32) -> (i32, i32) {
    %c0_i32 = arith.constant 0 : i32
    %c0_i32_0 = arith.constant 0 : i32
    return %arg0, %c0_i32 : i32, i32
  }
  func.func @transform_1(%arg0: i32) -> (i32, i32) {
    %c0_i32 = arith.constant 0 : i32
    %c0_i32_0 = arith.constant 0 : i32
    %c0_i32_1 = arith.constant 0 : i32
    return %c0_i32, %c0_i32_0 : i32, i32
  }
  func.func @transform_2(%arg0: i32) -> (i32, i32) {
    %c0_i32 = arith.constant 0 : i32
    %c0_i32_0 = arith.constant 0 : i32
    %c0_i32_1 = arith.constant 0 : i32
    return %c0_i32, %c0_i32_0 : i32, i32
  }
  func.func @transform_3(%arg0: i32) -> (i32, i32) {
    %c0_i32 = arith.constant 0 : i32
    %c0_i32_0 = arith.constant 0 : i32
    %c0_i32_1 = arith.constant 0 : i32
    return %c0_i32, %c0_i32_0 : i32, i32
  }
  func.func @transform_4(%arg0: i32) -> (i32, i32) {
    %c0_i32 = arith.constant 0 : i32
    %c0_i32_0 = arith.constant 0 : i32
    %c0_i32_1 = arith.constant 0 : i32
    return %c0_i32, %c0_i32_0 : i32, i32
  }
  func.func @transform_5(%arg0: i32) -> (i32, i32) {
    %c0_i32 = arith.constant 0 : i32
    %c0_i32_0 = arith.constant 0 : i32
    %c0_i32_1 = arith.constant 0 : i32
    return %c0_i32, %c0_i32_0 : i32, i32
  }
  func.func @transform_6(%arg0: i32) -> (i32, i32) {
    %c0_i32 = arith.constant 0 : i32
    %c0_i32_0 = arith.constant 0 : i32
    %c0_i32_1 = arith.constant 0 : i32
    return %c0_i32, %c0_i32_0 : i32, i32
  }
  func.func @transform_7(%arg0: i32) -> (i32, i32) {
    %c0_i32 = arith.constant 0 : i32
    %c0_i32_0 = arith.constant 0 : i32
    return %arg0, %c0_i32 : i32, i32
  }
}

</mosaic_0001>

<llo_original>
// kernel: tpu_custom_call.1
$region0: #{tpu_custom_call.1}
  #allocation0 [shape = 'u32[]', space=smem, size = 0x4, offset = 0x4, fixed_abs, tag = 'smem constant byte address 0x4 - core index']
  #allocation1 [shape = 'u32[144,128]{1,0:T(1,128)}', space=vmem, size = 0x12000, scoped, tag = 'internal scratch']
  %s0 = inlined_call_operand.vmem [shape: f32[128,32], index: 0, kind: input, shape index: {}]
  %s1 = inlined_call_operand.vmem [shape: bf16[32,128], index: 1, kind: input, shape index: {}]
  %s2 = inlined_call_operand.vmem [shape: f32[1,128], index: 2, kind: input, shape index: {}]
  %s3 = inlined_call_operand.vmem [shape: bf16[128,128], index: 3, kind: input, shape index: {}]
  %s4 = inlined_call_operand.vmem [shape: f32[1,128], index: 4, kind: input, shape index: {}]
  %s5 = inlined_call_operand.vmem [shape: bf16[128,128], index: 5, kind: input, shape index: {}]
  %s6 = inlined_call_operand.vmem [shape: f32[1,128], index: 6, kind: input, shape index: {}]
  %s7 = inlined_call_operand.hbm [shape: f32[128,128], index: 7, kind: output, shape index: {}]
  %s8 = sld [smem:[#allocation0]]
  $region61: #{tpu_custom_call.1} parent=0
    _
  %s10 = ssub.s32 1, %s8
  %s11 = scalar_select 0, %s10, %s8
  $region1: #{tpu_custom_call.1} parent=0
    #allocation2 [shape = 'u8[65536]{0}', space=vmem, size = 0x10000, scoped, tag = 'output window, operand 0']
    #allocation3 [shape = 's32[2]{0}', space=sflag, size = 0x8, scoped, tag = 'scoped memory for tpu_custom_call.1']
    %12 = vsyncpa [#allocation3], 0
    %s13 = scalar_lea.sflag [#allocation3], 1
    %14 = vsyncpa %s13, 0
    loop: start=0, step=1, limit=4
    $region2: #{tpu_custom_call.1} parent=1 // loop_pre_header
      _
    $region3: #{tpu_custom_call.1} parent=1 // loop_header
      %s16 = sphi 0, %s20
      %p17 = scmp.ge.s32.totalorder %s16, 4
      %s26 = sphi 0, %s28
      %s29 = sphi 0, %s26
      %s30 = sphi 0, %s29
      %s46 = sphi 0, %s30
      %s50 = sphi 0, %s50
      %s52 = sphi 0, %s50
      %s53 = sphi 0, %s52
      %s67 = sphi 0, %s53
      %s71 = sphi 0, %s71
      %s73 = sphi 0, %s71
      %s74 = sphi 0, %s73
      %s88 = sphi 0, %s74
      %s92 = sphi 0, %s92
      %s94 = sphi 0, %s92
      %s95 = sphi 0, %s94
      %s109 = sphi 0, %s95
      %s113 = sphi 0, %s113
      %s115 = sphi 0, %s113
      %s116 = sphi 0, %s115
      %s130 = sphi 0, %s116
      %s134 = sphi 0, %s134
      %s136 = sphi 0, %s134
      %s137 = sphi 0, %s136
      %s151 = sphi 0, %s137
      %s155 = sphi 0, %s155
      %s157 = sphi 0, %s155
      %s158 = sphi 0, %s157
      %s172 = sphi 0, %s158
      %s178 = sphi 0, %s180
      %s181 = sphi 0, %s178
      %s182 = sphi 0, %s181
      %s198 = sphi 0, %s182
    $region4: #{tpu_custom_call.1} parent=1 // loop_header_branch
      %19 = sbr.rel (%p17) target = $region8
    $region5: #{tpu_custom_call.1} parent=1 // loop_body
      %s21 = ssub.s32 %s16, 1
      %s22 = ssub.s32 %s16, 2
      %s23 = sadd.s32 %s16, 1
      %s24 = ssub.s32 %s16, %s23
      %p25 = scmp.eq.s32.totalorder %s24, 0
      %s27 = sadd.s32 %s26, 1
      %s28 = scalar_select %p25, %s26, %s27
      %p31 = pneg %p25
      %p32 = scmp.eq.s32.totalorder %s16, 1
      %p33 = por %p31, %p32
      %p34 = scmp.ne.s32.totalorder %s26, %s29
      %p35 = scmp.eq.s32.totalorder %s16, 0
      %p36 = por %p34, %p35
      %p37 = scmp.ne.s32.totalorder %s26, %s29
      %p38 = scmp.eq.s32.totalorder %s21, 1
      %p39 = por %p37, %p38
      %p40 = scmp.ne.s32.totalorder %s29, %s30
      %p41 = scmp.eq.s32.totalorder %s21, 0
      %p42 = por %p40, %p41
      %p43 = scmp.ne.s32.totalorder %s29, %s30
      %p44 = scmp.eq.s32.totalorder %s22, 1
      %p45 = por %p43, %p44
      %p47 = scmp.ne.s32.totalorder %s30, %s46
      %p48 = scmp.eq.s32.totalorder %s22, 0
      %p49 = por %p47, %p48
      %s51 = sadd.s32 %s50, 1
      %p54 = scmp.eq.s32.totalorder %s16, 1
      %p55 = scmp.ne.s32.totalorder %s50, %s52
      %p56 = scmp.eq.s32.totalorder %s16, 0
      %p57 = por %p55, %p56
      %p58 = scmp.ne.s32.totalorder %s50, %s52
      %p59 = scmp.eq.s32.totalorder %s21, 1
      %p60 = por %p58, %p59
      %p61 = scmp.ne.s32.totalorder %s52, %s53
      %p62 = scmp.eq.s32.totalorder %s21, 0
      %p63 = por %p61, %p62
      %p64 = scmp.ne.s32.totalorder %s52, %s53
      %p65 = scmp.eq.s32.totalorder %s22, 1
      %p66 = por %p64, %p65
      %p68 = scmp.ne.s32.totalorder %s53, %s67
      %p69 = scmp.eq.s32.totalorder %s22, 0
      %p70 = por %p68, %p69
      %s72 = sadd.s32 %s71, 1
      %p75 = scmp.eq.s32.totalorder %s16, 1
      %p76 = scmp.ne.s32.totalorder %s71, %s73
      %p77 = scmp.eq.s32.totalorder %s16, 0
      %p78 = por %p76, %p77
      %p79 = scmp.ne.s32.totalorder %s71, %s73
      %p80 = scmp.eq.s32.totalorder %s21, 1
      %p81 = por %p79, %p80
      %p82 = scmp.ne.s32.totalorder %s73, %s74
      %p83 = scmp.eq.s32.totalorder %s21, 0
      %p84 = por %p82, %p83
      %p85 = scmp.ne.s32.totalorder %s73, %s74
      %p86 = scmp.eq.s32.totalorder %s22, 1
      %p87 = por %p85, %p86
      %p89 = scmp.ne.s32.totalorder %s74, %s88
      %p90 = scmp.eq.s32.totalorder %s22, 0
      %p91 = por %p89, %p90
      %s93 = sadd.s32 %s92, 1
      %p96 = scmp.eq.s32.totalorder %s16, 1
      %p97 = scmp.ne.s32.totalorder %s92, %s94
      %p98 = scmp.eq.s32.totalorder %s16, 0
      %p99 = por %p97, %p98
      %p100 = scmp.ne.s32.totalorder %s92, %s94
      %p101 = scmp.eq.s32.totalorder %s21, 1
      %p102 = por %p100, %p101
      %p103 = scmp.ne.s32.totalorder %s94, %s95
      %p104 = scmp.eq.s32.totalorder %s21, 0
      %p105 = por %p103, %p104
      %p106 = scmp.ne.s32.totalorder %s94, %s95
      %p107 = scmp.eq.s32.totalorder %s22, 1
      %p108 = por %p106, %p107
      %p110 = scmp.ne.s32.totalorder %s95, %s109
      %p111 = scmp.eq.s32.totalorder %s22, 0
      %p112 = por %p110, %p111
      %s114 = sadd.s32 %s113, 1
      %p117 = scmp.eq.s32.totalorder %s16, 1
      %p118 = scmp.ne.s32.totalorder %s113, %s115
      %p119 = scmp.eq.s32.totalorder %s16, 0
      %p120 = por %p118, %p119
      %p121 = scmp.ne.s32.totalorder %s113, %s115
      %p122 = scmp.eq.s32.totalorder %s21, 1
      %p123 = por %p121, %p122
      %p124 = scmp.ne.s32.totalorder %s115, %s116
      %p125 = scmp.eq.s32.totalorder %s21, 0
      %p126 = por %p124, %p125
      %p127 = scmp.ne.s32.totalorder %s115, %s116
      %p128 = scmp.eq.s32.totalorder %s22, 1
      %p129 = por %p127, %p128
      %p131 = scmp.ne.s32.totalorder %s116, %s130
      %p132 = scmp.eq.s32.totalorder %s22, 0
      %p133 = por %p131, %p132
      %s135 = sadd.s32 %s134, 1
      %p138 = scmp.eq.s32.totalorder %s16, 1
      %p139 = scmp.ne.s32.totalorder %s134, %s136
      %p140 = scmp.eq.s32.totalorder %s16, 0
      %p141 = por %p139, %p140
      %p142 = scmp.ne.s32.totalorder %s134, %s136
      %p143 = scmp.eq.s32.totalorder %s21, 1
      %p144 = por %p142, %p143
      %p145 = scmp.ne.s32.totalorder %s136, %s137
      %p146 = scmp.eq.s32.totalorder %s21, 0
      %p147 = por %p145, %p146
      %p148 = scmp.ne.s32.totalorder %s136, %s137
      %p149 = scmp.eq.s32.totalorder %s22, 1
      %p150 = por %p148, %p149
      %p152 = scmp.ne.s32.totalorder %s137, %s151
      %p153 = scmp.eq.s32.totalorder %s22, 0
      %p154 = por %p152, %p153
      %s156 = sadd.s32 %s155, 1
      %p159 = scmp.eq.s32.totalorder %s16, 1
      %p160 = scmp.ne.s32.totalorder %s155, %s157
      %p161 = scmp.eq.s32.totalorder %s16, 0
      %p162 = por %p160, %p161
      %p163 = scmp.ne.s32.totalorder %s155, %s157
      %p164 = scmp.eq.s32.totalorder %s21, 1
      %p165 = por %p163, %p164
      %p166 = scmp.ne.s32.totalorder %s157, %s158
      %p167 = scmp.eq.s32.totalorder %s21, 0
      %p168 = por %p166, %p167
      %p169 = scmp.ne.s32.totalorder %s157, %s158
      %p170 = scmp.eq.s32.totalorder %s22, 1
      %p171 = por %p169, %p170
      %p173 = scmp.ne.s32.totalorder %s158, %s172
      %p174 = scmp.eq.s32.totalorder %s22, 0
      %p175 = por %p173, %p174
      %s176 = ssub.s32 %s16, %s23
      %p177 = scmp.eq.s32.totalorder %s176, 0
      %s179 = sadd.s32 %s178, 1
      %s180 = scalar_select %p177, %s178, %s179
      %p183 = pneg %p177
      %p184 = scmp.eq.s32.totalorder %s16, 1
      %p185 = por %p183, %p184
      %p186 = scmp.ne.s32.totalorder %s178, %s181
      %p187 = scmp.eq.s32.totalorder %s16, 0
      %p188 = por %p186, %p187
      %p189 = scmp.ne.s32.totalorder %s178, %s181
      %p190 = scmp.eq.s32.totalorder %s21, 1
      %p191 = por %p189, %p190
      %p192 = scmp.ne.s32.totalorder %s181, %s182
      %p193 = scmp.eq.s32.totalorder %s21, 0
      %p194 = por %p192, %p193
      %p195 = scmp.ne.s32.totalorder %s181, %s182
      %p196 = scmp.eq.s32.totalorder %s22, 1
      %p197 = por %p195, %p196
      %p199 = scmp.ne.s32.totalorder %s182, %s198
      %p200 = scmp.eq.s32.totalorder %s22, 0
      %p201 = por %p199, %p200
      %p202 = scmp.le.s32.totalorder 1, %s16
      %p203 = scmp.lt.s32.totalorder %s16, 3
      %p204 = pnand %p202, %p203
      %p205 = pneg %p204
      // Predicated region
      $region9: #{tpu_custom_call.1} parent=5 // pred_check
        _
      $region10: #{tpu_custom_call.1} parent=5 // pred_check_branch
        %207 = sbr.rel (%p204) target = $region12
      $region11: #{tpu_custom_call.1} parent=5 // pred_region
        %s208 = ssub.s32 %s16, 1
        // Predicated region
        $region13: #{tpu_custom_call.1} parent=11 // pred_check
          %p209 = pneg %p63
        $region14: #{tpu_custom_call.1} parent=11 // pred_check_branch
          %211 = sbr.rel (%p209) target = $region16
        $region15: #{tpu_custom_call.1} parent=11 // pred_region
          _
        $region16: #{tpu_custom_call.1} parent=11 // pred_fallthru
          _
        // Predicated region
        $region17: #{tpu_custom_call.1} parent=11 // pred_check
          %p212 = pneg %p84
        $region18: #{tpu_custom_call.1} parent=11 // pred_check_branch
          %214 = sbr.rel (%p212) target = $region20
        $region19: #{tpu_custom_call.1} parent=11 // pred_region
          _
        $region20: #{tpu_custom_call.1} parent=11 // pred_fallthru
          _
        // Predicated region
        $region21: #{tpu_custom_call.1} parent=11 // pred_check
          %p215 = pneg %p105
        $region22: #{tpu_custom_call.1} parent=11 // pred_check_branch
          %217 = sbr.rel (%p215) target = $region24
        $region23: #{tpu_custom_call.1} parent=11 // pred_region
          _
        $region24: #{tpu_custom_call.1} parent=11 // pred_fallthru
          _
        // Predicated region
        $region25: #{tpu_custom_call.1} parent=11 // pred_check
          %p218 = pneg %p126
        $region26: #{tpu_custom_call.1} parent=11 // pred_check_branch
          %220 = sbr.rel (%p218) target = $region28
        $region27: #{tpu_custom_call.1} parent=11 // pred_region
          _
        $region28: #{tpu_custom_call.1} parent=11 // pred_fallthru
          _
        // Predicated region
        $region29: #{tpu_custom_call.1} parent=11 // pred_check
          %p221 = pneg %p147
        $region30: #{tpu_custom_call.1} parent=11 // pred_check_branch
          %223 = sbr.rel (%p221) target = $region32
        $region31: #{tpu_custom_call.1} parent=11 // pred_region
          _
        $region32: #{tpu_custom_call.1} parent=11 // pred_fallthru
          _
        // Predicated region
        $region33: #{tpu_custom_call.1} parent=11 // pred_check
          %p224 = pneg %p168
        $region34: #{tpu_custom_call.1} parent=11 // pred_check_branch
          %226 = sbr.rel (%p224) target = $region36
        $region35: #{tpu_custom_call.1} parent=11 // pred_region
          _
        $region36: #{tpu_custom_call.1} parent=11 // pred_fallthru
          _
      $region12: #{tpu_custom_call.1} parent=5 // pred_fallthru
        _
      %p227 = scmp.lt.s32.totalorder %s16, 2
      // Predicated region
      $region37: #{tpu_custom_call.1} parent=5 // pred_check
        %p228 = pneg %p227
      $region38: #{tpu_custom_call.1} parent=5 // pred_check_branch
        %230 = sbr.rel (%p228) target = $region40
      $region39: #{tpu_custom_call.1} parent=5 // pred_region
        // Predicated region
        $region41: #{tpu_custom_call.1} parent=39 // pred_check
          %p231 = pneg %p36
        $region42: #{tpu_custom_call.1} parent=39 // pred_check_branch
          %233 = sbr.rel (%p231) target = $region44
        $region43: #{tpu_custom_call.1} parent=39 // pred_region
          %s234 = smul.u32 8, %s16
          %p235 = scmp.lt.s32.totalorder %s234, 15
          %s236 = scalar_select %p235, %s234, 15
          %s237 = smul.addr %s236, 8
          %s238 = scalar_lea.vmem %s0, %s237
          %s239 = smul.u32 8, %s16
        $region44: #{tpu_custom_call.1} parent=39 // pred_fallthru
          _
      $region40: #{tpu_custom_call.1} parent=5 // pred_fallthru
        _
      %p240 = scmp.le.s32.totalorder 1, %s16
      %p241 = scmp.lt.s32.totalorder %s16, 3
      %p242 = pnand %p240, %p241
      %p243 = pneg %p242
      // Predicated region
      $region45: #{tpu_custom_call.1} parent=5 // pred_check
        _
      $region46: #{tpu_custom_call.1} parent=5 // pred_check_branch
        %245 = sbr.rel (%p242) target = $region48
      $region47: #{tpu_custom_call.1} parent=5 // pred_region
        %s246 = ssub.s32 %s16, 1
        %s247 = smul.u32 8, %s21
        %p248 = scmp.lt.s32.totalorder %s247, 15
        %s249 = scalar_select %p248, %s247, 15
        %s250 = smul.addr %s249, 8
        %s251 = scalar_lea.vmem %s0, %s250
        %p252 = pneg %p42
        %p253 = pneg %p39
        %p254 = pneg %p63
        %p255 = pneg %p60
        %p256 = pneg %p84
        %p257 = pneg %p81
        %p258 = pneg %p105
        %p259 = pneg %p102
        %p260 = pneg %p126
        %p261 = pneg %p123
        %p262 = pneg %p147
        %p263 = pneg %p144
        %p264 = pneg %p168
        %p265 = pneg %p165
        %p266 = pneg %p194
        %p267 = pneg %p191
        %s268 = sand.u32 %s181, 1
        %s269 = scalar_lea.sflag [#allocation3], %s268
        %s270 = sand.u32 %s181, 1
        %s271 = smul.addr %s270, 64
        %s272 = scalar_lea.vmem [#allocation2], %s271
        %s273 = smul.u32 8, %s21
        %p274 = scmp.lt.s32.totalorder %s273, 15
        %s275 = scalar_select %p274, %s273, 15
        %s276 = smul.addr %s275, 8
        %s277 = scalar_lea.vmem %s0, %s276
        %s278 = smul.u32 8, %s21
        %s279 = smul.u32 8, %s21
        %v281 = vld [vmem:[%s277] sm:$0xff]
        %v282 = vld [vmem:[%s277 + $0x8] sm:$0xff]
        %v283 = vld [vmem:[%s277 + $0x10] sm:$0xff]
        %v284 = vld [vmem:[%s277 + $0x18] sm:$0xff]
        %v285 = vld [vmem:[%s277 + $0x20] sm:$0xff]
        %v286 = vld [vmem:[%s277 + $0x28] sm:$0xff]
        %v287 = vld [vmem:[%s277 + $0x30] sm:$0xff]
        %v288 = vld [vmem:[%s277 + $0x38] sm:$0xff]
        %v289 = vpack.c.bf16 %v282, %v281
        %v290 = vpack.c.bf16 %v284, %v283
        %v291 = vpack.c.bf16 %v286, %v285
        %v292 = vpack.c.bf16 %v288, %v287
        %v293 = vld [vmem:[%s1] sm:$0xf]
        %v294 = vld [vmem:[%s1 + $0x4] sm:$0xf]
        %v295 = vld [vmem:[%s1 + $0x8] sm:$0xf]
        %v296 = vld [vmem:[%s1 + $0xc] sm:$0xf]
        %v297 = vld [vmem:[%s2] sm:$0x1]
        %v299 = vlaneseq
        %v300 = vshrl.u32 %v299, 7
        %v301 = vsub.s32 0, %v300
        %v302 = vrot.slane %v297, %v301
        %v308 = vunpack.c.l.b16 %v293
        %v309 = vunpack.c.l.b16 %v294
        %v310 = vunpack.c.l.b16 %v295
        %v311 = vunpack.c.l.b16 %v296
        %v312 = vpack.c.b16 %v309, %v308
        %v313 = vpack.c.b16 %v311, %v310
        %vm316 = vcmask 261120
        %v318 = vsel %vm316, %v289, 0
        %v321 = vsel %vm316, %v290, 0
        %v324 = vsel %vm316, %v291, 0
        %v327 = vsel %vm316, %v292, 0
        %329 = vmatprep.subr.bf16.mxu0 0
        %330 = vmatpush1.bf16.msra.mxu0 0
        %331 = vmatprep.subr.bf16.mxu0 0
        %332 = vmatpush1.bf16.msra.mxu0 0
        %333 = vmatprep.subr.bf16.mxu0 0
        %334 = vmatpush1.bf16.msra.mxu0 0
        %335 = vmatprep.subr.bf16.mxu0 0
        %336 = vmatpush1.bf16.msra.mxu0 0
        %337 = vmatprep.subr.bf16.mxu0 0
        %338 = vmatpush1.bf16.msra.mxu0 0
        %339 = vmatprep.subr.bf16.mxu0 0
        %340 = vmatpush1.bf16.msra.mxu0 0
        %341 = vmatprep.subr.bf16.mxu0 0
        %342 = vmatpush1.bf16.msra.mxu0 %v313
        %343 = vmatprep.subr.bf16.mxu0 0
        %344 = vmatpush1.bf16.msra.mxu0 %v312
        %345 = vmatprep.subr.bf16.mxu0 0
        %346 = vmatpush2.bf16.msra.mxu0 0
        %347 = vmatprep.subr.bf16.mxu0 0
        %348 = vmatpush2.bf16.msra.mxu0 0
        %349 = vmatprep.subr.bf16.mxu0 0
        %350 = vmatpush2.bf16.msra.mxu0 0
        %351 = vmatprep.subr.bf16.mxu0 0
        %352 = vmatpush2.bf16.msra.mxu0 0
        %353 = vmatprep.subr.bf16.mxu0 0
        %354 = vmatpush2.bf16.msra.mxu0 0
        %355 = vmatprep.subr.bf16.mxu0 0
        %356 = vmatpush2.bf16.msra.mxu0 0
        %357 = vmatprep.subr.bf16.mxu0 0
        %358 = vmatpush2.bf16.msra.mxu0 0
        %359 = vmatprep.subr.bf16.mxu0 0
        %360 = vmatpush2.bf16.msra.mxu0 0
        %361 = vmatprep.mubr.bf16.mxu0 0
        %362 = vmatmul.mubr.bf16.gmra.mxu0 %v318
        %v363 = vpop.f32.mrf.mxu0
        %v364 = vadd.f32 %v302, %v363
        %v365 = vpop.f32.mrf.mxu0
        %v366 = vpop.f32.mrf.mxu0
        %v367 = vadd.f32 %v302, %v366
        %v368 = vpop.f32.mrf.mxu0
        %369 = vmatprep.mubr.bf16.mxu0 0
        %370 = vmatmul.mubr.bf16.gmra.mxu0 %v321
        %v371 = vpop.f32.mrf.mxu0
        %v372 = vadd.f32 %v302, %v371
        %v373 = vpop.f32.mrf.mxu0
        %v374 = vpop.f32.mrf.mxu0
        %v375 = vadd.f32 %v302, %v374
        %v376 = vpop.f32.mrf.mxu0
        %377 = vmatprep.mubr.bf16.mxu0 0
        %378 = vmatmul.mubr.bf16.gmra.mxu0 %v324
        %v379 = vpop.f32.mrf.mxu0
        %v380 = vadd.f32 %v302, %v379
        %v381 = vpop.f32.mrf.mxu0
        %v382 = vpop.f32.mrf.mxu0
        %v383 = vadd.f32 %v302, %v382
        %v384 = vpop.f32.mrf.mxu0
        %385 = vmatprep.mubr.bf16.mxu0 0
        %386 = vmatmul.mubr.bf16.gmra.mxu0 %v327
        %v387 = vpop.f32.mrf.mxu0
        %v388 = vadd.f32 %v302, %v387
        %v389 = vpop.f32.mrf.mxu0
        %v390 = vpop.f32.mrf.mxu0
        %v391 = vadd.f32 %v302, %v390
        %v392 = vpop.f32.mrf.mxu0
        %393 = vdwg.mxu0
        %v394 = vmax.f32 %v364, 0.0
        %v395 = vmax.f32 %v367, 0.0
        %v396 = vmax.f32 %v372, 0.0
        %v397 = vmax.f32 %v375, 0.0
        %v398 = vmax.f32 %v380, 0.0
        %v399 = vmax.f32 %v383, 0.0
        %v400 = vmax.f32 %v388, 0.0
        %v401 = vmax.f32 %v391, 0.0
        %v402 = vpack.c.bf16 %v395, %v394
        %v403 = vpack.c.bf16 %v397, %v396
        %v404 = vpack.c.bf16 %v399, %v398
        %v405 = vpack.c.bf16 %v401, %v400
        %v406 = vld [vmem:[%s3] sm:$0xf]
        %v407 = vld [vmem:[%s3 + $0x4] sm:$0xf]
        %v408 = vld [vmem:[%s3 + $0x8] sm:$0xf]
        %v409 = vld [vmem:[%s3 + $0xc] sm:$0xf]
        %v410 = vld [vmem:[%s3 + $0x10] sm:$0xf]
        %v411 = vld [vmem:[%s3 + $0x14] sm:$0xf]
        %v412 = vld [vmem:[%s3 + $0x18] sm:$0xf]
        %v413 = vld [vmem:[%s3 + $0x1c] sm:$0xf]
        %v414 = vld [vmem:[%s3 + $0x20] sm:$0xf]
        %v415 = vld [vmem:[%s3 + $0x24] sm:$0xf]
        %v416 = vld [vmem:[%s3 + $0x28] sm:$0xf]
        %v417 = vld [vmem:[%s3 + $0x2c] sm:$0xf]
        %v418 = vld [vmem:[%s3 + $0x30] sm:$0xf]
        %v419 = vld [vmem:[%s3 + $0x34] sm:$0xf]
        %v420 = vld [vmem:[%s3 + $0x38] sm:$0xf]
        %v421 = vld [vmem:[%s3 + $0x3c] sm:$0xf]
        %v422 = vld [vmem:[%s4] sm:$0x1]
        %v424 = vlaneseq
        %v425 = vshrl.u32 %v424, 7
        %v426 = vsub.s32 0, %v425
        %v427 = vrot.slane %v422, %v426
        %v445 = vunpack.c.l.b16 %v406
        %v446 = vunpack.c.l.b16 %v407
        %v447 = vunpack.c.l.b16 %v408
        %v448 = vunpack.c.l.b16 %v409
        %v449 = vunpack.c.l.b16 %v410
        %v450 = vunpack.c.l.b16 %v411
        %v451 = vunpack.c.l.b16 %v412
        %v452 = vunpack.c.l.b16 %v413
        %v453 = vunpack.c.l.b16 %v414
        %v454 = vunpack.c.l.b16 %v415
        %v455 = vunpack.c.l.b16 %v416
        %v456 = vunpack.c.l.b16 %v417
        %v457 = vunpack.c.l.b16 %v418
        %v458 = vunpack.c.l.b16 %v419
        %v459 = vunpack.c.l.b16 %v420
        %v460 = vunpack.c.l.b16 %v421
        %v461 = vpack.c.b16 %v446, %v445
        %v462 = vpack.c.b16 %v448, %v447
        %v463 = vpack.c.b16 %v450, %v449
        %v464 = vpack.c.b16 %v452, %v451
        %v465 = vpack.c.b16 %v454, %v453
        %v466 = vpack.c.b16 %v456, %v455
        %v467 = vpack.c.b16 %v458, %v457
        %v468 = vpack.c.b16 %v460, %v459
        %477 = vmatprep.subr.bf16.mxu0 0
        %478 = vmatpush1.bf16.msra.mxu0 %v468
        %479 = vmatprep.subr.bf16.mxu0 0
        %480 = vmatpush1.bf16.msra.mxu0 %v467
        %481 = vmatprep.subr.bf16.mxu0 0
        %482 = vmatpush1.bf16.msra.mxu0 %v466
        %483 = vmatprep.subr.bf16.mxu0 0
        %484 = vmatpush1.bf16.msra.mxu0 %v465
        %485 = vmatprep.subr.bf16.mxu0 0
        %486 = vmatpush1.bf16.msra.mxu0 %v464
        %487 = vmatprep.subr.bf16.mxu0 0
        %488 = vmatpush1.bf16.msra.mxu0 %v463
        %489 = vmatprep.subr.bf16.mxu0 0
        %490 = vmatpush1.bf16.msra.mxu0 %v462
        %491 = vmatprep.subr.bf16.mxu0 0
        %492 = vmatpush1.bf16.msra.mxu0 %v461
        %493 = vmatprep.subr.bf16.mxu0 0
        %494 = vmatpush2.bf16.msra.mxu0 0
        %495 = vmatprep.subr.bf16.mxu0 0
        %496 = vmatpush2.bf16.msra.mxu0 0
        %497 = vmatprep.subr.bf16.mxu0 0
        %498 = vmatpush2.bf16.msra.mxu0 0
        %499 = vmatprep.subr.bf16.mxu0 0
        %500 = vmatpush2.bf16.msra.mxu0 0
        %501 = vmatprep.subr.bf16.mxu0 0
        %502 = vmatpush2.bf16.msra.mxu0 0
        %503 = vmatprep.subr.bf16.mxu0 0
        %504 = vmatpush2.bf16.msra.mxu0 0
        %505 = vmatprep.subr.bf16.mxu0 0
        %506 = vmatpush2.bf16.msra.mxu0 0
        %507 = vmatprep.subr.bf16.mxu0 0
        %508 = vmatpush2.bf16.msra.mxu0 0
        %509 = vmatprep.mubr.bf16.mxu0 0
        %510 = vmatmul.mubr.bf16.gmra.mxu0 %v402
        %v511 = vpop.f32.mrf.mxu0
        %v512 = vadd.f32 %v427, %v511
        %v513 = vpop.f32.mrf.mxu0
        %v514 = vpop.f32.mrf.mxu0
        %v515 = vadd.f32 %v427, %v514
        %v516 = vpop.f32.mrf.mxu0
        %517 = vmatprep.mubr.bf16.mxu0 0
        %518 = vmatmul.mubr.bf16.gmra.mxu0 %v403
        %v519 = vpop.f32.mrf.mxu0
        %v520 = vadd.f32 %v427, %v519
        %v521 = vpop.f32.mrf.mxu0
        %v522 = vpop.f32.mrf.mxu0
        %v523 = vadd.f32 %v427, %v522
        %v524 = vpop.f32.mrf.mxu0
        %525 = vmatprep.mubr.bf16.mxu0 0
        %526 = vmatmul.mubr.bf16.gmra.mxu0 %v404
        %v527 = vpop.f32.mrf.mxu0
        %v528 = vadd.f32 %v427, %v527
        %v529 = vpop.f32.mrf.mxu0
        %v530 = vpop.f32.mrf.mxu0
        %v531 = vadd.f32 %v427, %v530
        %v532 = vpop.f32.mrf.mxu0
        %533 = vmatprep.mubr.bf16.mxu0 0
        %534 = vmatmul.mubr.bf16.gmra.mxu0 %v405
        %v535 = vpop.f32.mrf.mxu0
        %v536 = vadd.f32 %v427, %v535
        %v537 = vpop.f32.mrf.mxu0
        %v538 = vpop.f32.mrf.mxu0
        %v539 = vadd.f32 %v427, %v538
        %v540 = vpop.f32.mrf.mxu0
        %541 = vdwg.mxu0
        %v542 = vtanh.pop %v512
        %v543 = vtanh.pop %v515
        %v544 = vtanh.pop %v520
        %v545 = vtanh.pop %v523
        %v546 = vtanh.pop %v528
        %v547 = vtanh.pop %v531
        %v548 = vtanh.pop %v536
        %v549 = vtanh.pop %v539
        %v550 = vpack.c.bf16 %v543, %v542
        %v551 = vpack.c.bf16 %v545, %v544
        %v552 = vpack.c.bf16 %v547, %v546
        %v553 = vpack.c.bf16 %v549, %v548
        %v554 = vld [vmem:[%s5] sm:$0xf]
        %v555 = vld [vmem:[%s5 + $0x4] sm:$0xf]
        %v556 = vld [vmem:[%s5 + $0x8] sm:$0xf]
        %v557 = vld [vmem:[%s5 + $0xc] sm:$0xf]
        %v558 = vld [vmem:[%s5 + $0x10] sm:$0xf]
        %v559 = vld [vmem:[%s5 + $0x14] sm:$0xf]
        %v560 = vld [vmem:[%s5 + $0x18] sm:$0xf]
        %v561 = vld [vmem:[%s5 + $0x1c] sm:$0xf]
        %v562 = vld [vmem:[%s5 + $0x20] sm:$0xf]
        %v563 = vld [vmem:[%s5 + $0x24] sm:$0xf]
        %v564 = vld [vmem:[%s5 + $0x28] sm:$0xf]
        %v565 = vld [vmem:[%s5 + $0x2c] sm:$0xf]
        %v566 = vld [vmem:[%s5 + $0x30] sm:$0xf]
        %v567 = vld [vmem:[%s5 + $0x34] sm:$0xf]
        %v568 = vld [vmem:[%s5 + $0x38] sm:$0xf]
        %v569 = vld [vmem:[%s5 + $0x3c] sm:$0xf]
        %v570 = vld [vmem:[%s6] sm:$0x1]
        %v572 = vlaneseq
        %v573 = vshrl.u32 %v572, 7
        %v574 = vsub.s32 0, %v573
        %v575 = vrot.slane %v570, %v574
        %v593 = vunpack.c.l.b16 %v554
        %v594 = vunpack.c.l.b16 %v555
        %v595 = vunpack.c.l.b16 %v556
        %v596 = vunpack.c.l.b16 %v557
        %v597 = vunpack.c.l.b16 %v558
        %v598 = vunpack.c.l.b16 %v559
        %v599 = vunpack.c.l.b16 %v560
        %v600 = vunpack.c.l.b16 %v561
        %v601 = vunpack.c.l.b16 %v562
        %v602 = vunpack.c.l.b16 %v563
        %v603 = vunpack.c.l.b16 %v564
        %v604 = vunpack.c.l.b16 %v565
        %v605 = vunpack.c.l.b16 %v566
        %v606 = vunpack.c.l.b16 %v567
        %v607 = vunpack.c.l.b16 %v568
        %v608 = vunpack.c.l.b16 %v569
        %v609 = vpack.c.b16 %v594, %v593
        %v610 = vpack.c.b16 %v596, %v595
        %v611 = vpack.c.b16 %v598, %v597
        %v612 = vpack.c.b16 %v600, %v599
        %v613 = vpack.c.b16 %v602, %v601
        %v614 = vpack.c.b16 %v604, %v603
        %v615 = vpack.c.b16 %v606, %v605
        %v616 = vpack.c.b16 %v608, %v607
        %625 = vmatprep.subr.bf16.mxu0 0
        %626 = vmatpush1.bf16.msra.mxu0 %v616
        %627 = vmatprep.subr.bf16.mxu0 0
        %628 = vmatpush1.bf16.msra.mxu0 %v615
        %629 = vmatprep.subr.bf16.mxu0 0
        %630 = vmatpush1.bf16.msra.mxu0 %v614
        %631 = vmatprep.subr.bf16.mxu0 0
        %632 = vmatpush1.bf16.msra.mxu0 %v613
        %633 = vmatprep.subr.bf16.mxu0 0
        %634 = vmatpush1.bf16.msra.mxu0 %v612
        %635 = vmatprep.subr.bf16.mxu0 0
        %636 = vmatpush1.bf16.msra.mxu0 %v611
        %637 = vmatprep.subr.bf16.mxu0 0
        %638 = vmatpush1.bf16.msra.mxu0 %v610
        %639 = vmatprep.subr.bf16.mxu0 0
        %640 = vmatpush1.bf16.msra.mxu0 %v609
        %641 = vmatprep.subr.bf16.mxu0 0
        %642 = vmatpush2.bf16.msra.mxu0 0
        %643 = vmatprep.subr.bf16.mxu0 0
        %644 = vmatpush2.bf16.msra.mxu0 0
        %645 = vmatprep.subr.bf16.mxu0 0
        %646 = vmatpush2.bf16.msra.mxu0 0
        %647 = vmatprep.subr.bf16.mxu0 0
        %648 = vmatpush2.bf16.msra.mxu0 0
        %649 = vmatprep.subr.bf16.mxu0 0
        %650 = vmatpush2.bf16.msra.mxu0 0
        %651 = vmatprep.subr.bf16.mxu0 0
        %652 = vmatpush2.bf16.msra.mxu0 0
        %653 = vmatprep.subr.bf16.mxu0 0
        %654 = vmatpush2.bf16.msra.mxu0 0
        %655 = vmatprep.subr.bf16.mxu0 0
        %656 = vmatpush2.bf16.msra.mxu0 0
        %657 = vmatprep.mubr.bf16.mxu0 0
        %658 = vmatmul.mubr.bf16.gmra.mxu0 %v550
        %v659 = vpop.f32.mrf.mxu0
        %v660 = vadd.f32 %v575, %v659
        %v661 = vpop.f32.mrf.mxu0
        %v662 = vpop.f32.mrf.mxu0
        %v663 = vadd.f32 %v575, %v662
        %v664 = vpop.f32.mrf.mxu0
        %665 = vmatprep.mubr.bf16.mxu0 0
        %666 = vmatmul.mubr.bf16.gmra.mxu0 %v551
        %v667 = vpop.f32.mrf.mxu0
        %v668 = vadd.f32 %v575, %v667
        %v669 = vpop.f32.mrf.mxu0
        %v670 = vpop.f32.mrf.mxu0
        %v671 = vadd.f32 %v575, %v670
        %v672 = vpop.f32.mrf.mxu0
        %673 = vmatprep.mubr.bf16.mxu0 0
        %674 = vmatmul.mubr.bf16.gmra.mxu0 %v552
        %v675 = vpop.f32.mrf.mxu0
        %v676 = vadd.f32 %v575, %v675
        %v677 = vpop.f32.mrf.mxu0
        %v678 = vpop.f32.mrf.mxu0
        %v679 = vadd.f32 %v575, %v678
        %v680 = vpop.f32.mrf.mxu0
        %681 = vmatprep.mubr.bf16.mxu0 0
        %682 = vmatmul.mubr.bf16.gmra.mxu0 %v553
        %v683 = vpop.f32.mrf.mxu0
        %v684 = vadd.f32 %v575, %v683
        %v685 = vpop.f32.mrf.mxu0
        %v686 = vpop.f32.mrf.mxu0
        %v687 = vadd.f32 %v575, %v686
        %v688 = vpop.f32.mrf.mxu0
        %689 = vdwg.mxu0
        %690 = vst [vmem:[%s272] sm:$0xff] %v660
        %691 = vst [vmem:[%s272 + $0x8] sm:$0xff] %v663
        %692 = vst [vmem:[%s272 + $0x10] sm:$0xff] %v668
        %693 = vst [vmem:[%s272 + $0x18] sm:$0xff] %v671
        %694 = vst [vmem:[%s272 + $0x20] sm:$0xff] %v676
        %695 = vst [vmem:[%s272 + $0x28] sm:$0xff] %v679
        %696 = vst [vmem:[%s272 + $0x30] sm:$0xff] %v684
        %697 = vst [vmem:[%s272 + $0x38] sm:$0xff] %v687
        %s698 = sand.u32 %s181, 1
        %s699 = scalar_lea.sflag [#allocation3], %s698
        %s700 = sand.u32 %s181, 1
        %s701 = smul.addr %s700, 64
        %s702 = scalar_lea.vmem [#allocation2], %s701
        // Predicated region
        $region49: #{tpu_custom_call.1} parent=47 // pred_check
          %p703 = pneg %p191
        $region50: #{tpu_custom_call.1} parent=47 // pred_check_branch
          %705 = sbr.rel (%p703) target = $region52
        $region51: #{tpu_custom_call.1} parent=47 // pred_region
          %s706 = smul.u32 8, %s21
          %s708 = ssub.s32 1024, 1024
          %709 = vsyncadd %s699, %s708
          %s710 = smul.addr %s706, 128
          %s711 = scalar_lea.hbm %s7, %s710
          %s712 = sshll.u32 %s702, 4
          %s713 = int_to_ptr.vmem [resolvable:$true] %s712
          %718 = dma.vmem_to_hbm [thread:$0]  %s713, 1024, %s711, %s699, 128, 128, 8
        $region52: #{tpu_custom_call.1} parent=47 // pred_fallthru
          _
      $region48: #{tpu_custom_call.1} parent=5 // pred_fallthru
        _
      %p719 = scmp.le.s32.totalorder 2, %s16
      // Predicated region
      $region53: #{tpu_custom_call.1} parent=5 // pred_check
        %p720 = pneg %p719
      $region54: #{tpu_custom_call.1} parent=5 // pred_check_branch
        %722 = sbr.rel (%p720) target = $region56
      $region55: #{tpu_custom_call.1} parent=5 // pred_region
        %s723 = ssub.s32 %s16, 2
        // Predicated region
        $region57: #{tpu_custom_call.1} parent=55 // pred_check
          %p724 = pneg %p197
        $region58: #{tpu_custom_call.1} parent=55 // pred_check_branch
          %726 = sbr.rel (%p724) target = $region60
        $region59: #{tpu_custom_call.1} parent=55 // pred_region
          %s727 = sand.u32 %s182, 1
          %s728 = scalar_lea.sflag [#allocation3], %s727
          %s729 = sand.u32 %s182, 1
          %s730 = smul.addr %s729, 64
          %s731 = scalar_lea.vmem [#allocation2], %s730
          %732 = dma.done %s728, 1024
        $region60: #{tpu_custom_call.1} parent=55 // pred_fallthru
          _
      $region56: #{tpu_custom_call.1} parent=5 // pred_fallthru
        _
    $region6: #{tpu_custom_call.1} parent=1 // loop_footer
      %s20 = sadd.s32 1, %s16
    $region7: #{tpu_custom_call.1} parent=1 // loop_footer_branch
      %15 = sbr.rel target = $region3
    $region8: #{tpu_custom_call.1} parent=1 // loop_exit
      _
    %733 = vsyncpa [#allocation3], 1
    %s734 = scalar_lea.sflag [#allocation3], 1
    %735 = vsyncpa %s734, 1

</llo_original>
